<compile_context>
chip_gen: v7x
topology: tpu7x:2x2x1
jax: 0.10.0
libtpu: 0.0.40
codegen_flags: <defaults>
</compile_context>

<pallas_src>
import jax
import jax.numpy as jnp
from jax.experimental import pallas as pl
from jax.experimental.pallas import tpu as pltpu

NEG_SLOPE = 0.01  # nn.LeakyReLU default negative_slope


def resblock_kernel(x_ref, w1_ref, b1_ref, w2_ref, b2_ref, o_ref):
    # x_ref: (Bt, D) f32   w*_ref: (D, D) bf16   b*_ref: (1, D) f32   o_ref: (Bt, D)
    # TODO(synk): dropout_1 / dropout_2 omitted (eval-mode identity); a training
    # variant would draw masks via pltpu.prng_seed / pltpu.prng_random_bits.
    xb = x_ref[...].astype(jnp.bfloat16)
    h = jnp.dot(xb, w1_ref[...], preferred_element_type=jnp.float32) + b1_ref[...]
    h = jnp.maximum(h, 0.0)                                      # ReLU (VPU)
    h = jnp.dot(h.astype(jnp.bfloat16), w2_ref[...],
                preferred_element_type=jnp.float32) + b2_ref[...]
    h = jnp.maximum(h, 0.0)                                      # ReLU (VPU)
    y = h + x_ref[...].astype(jnp.float32)                       # residual (re-read x)
    o_ref[...] = jnp.maximum(y, NEG_SLOPE * y).astype(o_ref.dtype)  # LeakyReLU(0.01)


def _vmem_limit_bytes() -> int:
    """~3/4 of physical VMEM (v5e/v6e: 128 MiB, v7x: 64 MiB/TC), capped at 112 MiB."""
    phys = 64 * 1024 * 1024  # conservative default (v7x per-TC VMEM)
    try:
        info = pltpu.get_tpu_info()
        phys = int(getattr(info, "vmem_capacity_bytes", phys)) or phys
    except Exception:
        pass
    return min((phys * 3) // 4, 112 * 1024 * 1024)


def _choose_block_rows(B: int, D: int, vmem_limit: int) -> int:
    """Row-block size: one grid step for small B (avoid ~0.35us/step overhead and
    sliver-M matmuls); otherwise the biggest sublane-aligned block that fits the
    VMEM budget (bf16 weights single-buffered, f32 x/out slabs double-buffered)."""
    resident = 2 * D * D * 2 + 2 * D * 4        # bf16 weights + f32 biases, single copy
    per_row = 28 * D                            # 2x-buffered f32 x + out, ~3 f32 temps
    headroom = 4 * 1024 * 1024
    cap = (vmem_limit - resident - headroom) // per_row
    cap = max(256, min(int(cap), 2048))
    cap = (cap // 8) * 8
    if B <= cap:
        return B                                # single grid step (block = full batch dim)
    return cap


@jax.jit
def resblock(x, w1, b1, w2, b2):
    """x: (B, D); w1/w2: (D, D) in (in, out) layout (= PyTorch weight.T); b1/b2: (D,)."""
    B, D = x.shape
    vmem_limit = _vmem_limit_bytes()
    bt = _choose_block_rows(B, D, vmem_limit)
    grid_steps = pl.cdiv(B, bt)

    # bf16 weights in HBM (halves weight streaming + VMEM); biases stay f32.
    w1b = w1.astype(jnp.bfloat16)
    w2b = w2.astype(jnp.bfloat16)
    b1_2d = b1.reshape(1, D).astype(jnp.float32)
    b2_2d = b2.reshape(1, D).astype(jnp.float32)

    cost = pl.CostEstimate(
        flops=4 * B * D * D + 6 * B * D,                    # two matmuls + epilogue
        transcendentals=0,
        bytes_accessed=4 * 2 * B * D + 2 * 2 * D * D + 4 * 2 * D,
    )

    resident_spec = dict(pipeline_mode=pl.Buffered(1))      # constant index_map -> 1 buffer

    return pl.pallas_call(
        resblock_kernel,
        out_shape=jax.ShapeDtypeStruct((B, D), x.dtype),
        grid_spec=pltpu.PrefetchScalarGridSpec(
            num_scalar_prefetch=0,
            grid=(grid_steps,),
            in_specs=[
                pl.BlockSpec((bt, D), lambda i: (i, 0)),                       # x rows
                pl.BlockSpec((D, D), lambda i: (0, 0), **resident_spec),       # W1 (bf16)
                pl.BlockSpec((1, D), lambda i: (0, 0), **resident_spec),       # b1
                pl.BlockSpec((D, D), lambda i: (0, 0), **resident_spec),       # W2 (bf16)
                pl.BlockSpec((1, D), lambda i: (0, 0), **resident_spec),       # b2
            ],
            out_specs=pl.BlockSpec((bt, D), lambda i: (i, 0)),
        ),
        compiler_params=pltpu.CompilerParams(
            dimension_semantics=("parallel",) if grid_steps >= 2 else ("arbitrary",),
            vmem_limit_bytes=int(vmem_limit),
        ),
        cost_estimate=cost,
    )(x, w1b, b1_2d, w2b, b2_2d)


def resblock_ref_mixed(x, w1, b1, w2, b2):
    """Reference matching the kernel's MXU numerics (bf16 operands, f32 accumulate)."""
    h = jnp.dot(x.astype(jnp.bfloat16), w1.astype(jnp.bfloat16),
                preferred_element_type=jnp.float32) + b1
    h = jnp.maximum(h, 0.0)
    h = jnp.dot(h.astype(jnp.bfloat16), w2.astype(jnp.bfloat16),
                preferred_element_type=jnp.float32) + b2
    h = jnp.maximum(h, 0.0)
    y = h + x.astype(jnp.float32)
    return jnp.maximum(y, NEG_SLOPE * y)


def resblock_ref_f32(x, w1, b1, w2, b2):
    """Pure-f32 reference of the original module semantics (sanity check)."""
    h = jnp.maximum(jnp.matmul(x, w1) + b1, 0.0)
    h = jnp.maximum(jnp.matmul(h, w2) + b2, 0.0)
    y = h + x
    return jnp.maximum(y, NEG_SLOPE * y)


if __name__ == "__main__":
    # Small TPU-friendly shapes: B=16 (one grid step, sublane-aligned),
    # in_dims=128 (one full lane group -> lane-dense, unmasked stores).
    B, D = 16, 128
    key = jax.random.PRNGKey(0)
    kx, kw1, kb1, kw2, kb2 = jax.random.split(key, 5)

    scale = 1.0 / jnp.sqrt(jnp.float32(D))
    x = jax.random.normal(kx, (B, D), dtype=jnp.float32)
    # PyTorch nn.Linear stores weight as (out, in); the kernel takes weight.T = (in, out).
    w1_pt = jax.random.normal(kw1, (D, D), dtype=jnp.float32) * scale
    w2_pt = jax.random.normal(kw2, (D, D), dtype=jnp.float32) * scale
    b1 = jax.random.normal(kb1, (D,), dtype=jnp.float32) * 0.1
    b2 = jax.random.normal(kb2, (D,), dtype=jnp.float32) * 0.1
    w1, w2 = w1_pt.T, w2_pt.T

    out = resblock(x, w1, b1, w2, b2)
    jax.block_until_ready(out)
    assert out.shape == (B, D)

    # Tight check vs a reference using the same mixed precision as the kernel.
    ref_mixed = resblock_ref_mixed(x, w1, b1, w2, b2)
    assert jnp.allclose(out, ref_mixed, atol=1e-3, rtol=1e-3), "mismatch vs mixed-precision reference"

    # Looser sanity check vs the original full-f32 module semantics.
    ref_f32 = resblock_ref_f32(x, w1, b1, w2, b2)
    assert jnp.allclose(out, ref_f32, atol=5e-2, rtol=5e-2), "mismatch vs f32 reference"

    print("KERNEL_OK")
</pallas_src>

<mosaic_0001>
module attributes {stable_mosaic.version = 11 : i64} {
  func.func @resblock_kernel(%arg0: i32, %arg1: memref<16x128xf32, #tpu.memory_space<vmem>>, %arg2: memref<128x128xbf16, #tpu.memory_space<vmem>>, %arg3: memref<1x128xf32, #tpu.memory_space<vmem>>, %arg4: memref<128x128xbf16, #tpu.memory_space<vmem>>, %arg5: memref<1x128xf32, #tpu.memory_space<vmem>>, %arg6: memref<16x128xf32, #tpu.memory_space<vmem>>) attributes {dimension_semantics = [#tpu.dimension_semantics<arbitrary>], iteration_bounds = array<i64: 1>, scalar_prefetch = 0 : i64, scratch_operands = 0 : i64, tpu.core_type = #tpu.core_type<tc>, window_params = [{transform_indices = @transform_0, window_bounds = array<i64: 16, 128>}, {pipeline_mode = #tpu.pipeline_mode<synchronous>, transform_indices = @transform_1, window_bounds = array<i64: 128, 128>}, {pipeline_mode = #tpu.pipeline_mode<synchronous>, transform_indices = @transform_2, window_bounds = array<i64: 1, 128>}, {pipeline_mode = #tpu.pipeline_mode<synchronous>, transform_indices = @transform_3, window_bounds = array<i64: 128, 128>}, {pipeline_mode = #tpu.pipeline_mode<synchronous>, transform_indices = @transform_4, window_bounds = array<i64: 1, 128>}, {transform_indices = @transform_5, window_bounds = array<i64: 16, 128>}]} {
    %c0 = arith.constant 0 : index
    %c0_0 = arith.constant 0 : index
    %0 = vector.load %arg1[%c0, %c0_0] : memref<16x128xf32, #tpu.memory_space<vmem>>, vector<16x128xf32>
    %1 = arith.truncf %0 : vector<16x128xf32> to vector<16x128xbf16>
    %c0_1 = arith.constant 0 : index
    %c0_2 = arith.constant 0 : index
    %2 = vector.load %arg2[%c0_1, %c0_2] : memref<128x128xbf16, #tpu.memory_space<vmem>>, vector<128x128xbf16>
    %cst = arith.constant dense<0.000000e+00> : vector<16x128xf32>
    %3 = tpu.matmul %1, %2, %cst {dimension_numbers = #tpu.dot_dimension_numbers<[1], [0], [0], [1], [0, 0, 1, 1], [], []>} : vector<16x128xbf16>, vector<128x128xbf16>, vector<16x128xf32> -> vector<16x128xf32>
    %c0_3 = arith.constant 0 : index
    %c0_4 = arith.constant 0 : index
    %4 = vector.load %arg3[%c0_3, %c0_4] : memref<1x128xf32, #tpu.memory_space<vmem>>, vector<1x128xf32>
    %5 = vector.broadcast %4 : vector<1x128xf32> to vector<16x128xf32>
    %6 = arith.addf %3, %5 : vector<16x128xf32>
    %cst_5 = arith.constant 0.000000e+00 : f32
    %7 = vector.broadcast %cst_5 : f32 to vector<16x128xf32>
    %8 = arith.maximumf %6, %7 : vector<16x128xf32>
    %9 = arith.truncf %8 : vector<16x128xf32> to vector<16x128xbf16>
    %c0_6 = arith.constant 0 : index
    %c0_7 = arith.constant 0 : index
    %10 = vector.load %arg4[%c0_6, %c0_7] : memref<128x128xbf16, #tpu.memory_space<vmem>>, vector<128x128xbf16>
    %cst_8 = arith.constant dense<0.000000e+00> : vector<16x128xf32>
    %11 = tpu.matmul %9, %10, %cst_8 {dimension_numbers = #tpu.dot_dimension_numbers<[1], [0], [0], [1], [0, 0, 1, 1], [], []>} : vector<16x128xbf16>, vector<128x128xbf16>, vector<16x128xf32> -> vector<16x128xf32>
    %c0_9 = arith.constant 0 : index
    %c0_10 = arith.constant 0 : index
    %12 = vector.load %arg5[%c0_9, %c0_10] : memref<1x128xf32, #tpu.memory_space<vmem>>, vector<1x128xf32>
    %13 = vector.broadcast %12 : vector<1x128xf32> to vector<16x128xf32>
    %14 = arith.addf %11, %13 : vector<16x128xf32>
    %cst_11 = arith.constant 0.000000e+00 : f32
    %15 = vector.broadcast %cst_11 : f32 to vector<16x128xf32>
    %16 = arith.maximumf %14, %15 : vector<16x128xf32>
    %c0_12 = arith.constant 0 : index
    %c0_13 = arith.constant 0 : index
    %17 = vector.load %arg1[%c0_12, %c0_13] : memref<16x128xf32, #tpu.memory_space<vmem>>, vector<16x128xf32>
    %18 = arith.addf %16, %17 : vector<16x128xf32>
    %cst_14 = arith.constant 0.00999999977 : f32
    %19 = vector.broadcast %cst_14 : f32 to vector<16x128xf32>
    %20 = arith.mulf %19, %18 : vector<16x128xf32>
    %21 = arith.maximumf %18, %20 : vector<16x128xf32>
    %c0_15 = arith.constant 0 : index
    %c0_16 = arith.constant 0 : index
    %22 = vector.load %arg6[%c0_15, %c0_16] : memref<16x128xf32, #tpu.memory_space<vmem>>, vector<16x128xf32>
    tpu.vector_store %arg6[%c0_15, %c0_16], %21 {strides = array<i32>} : memref<16x128xf32, #tpu.memory_space<vmem>>, vector<16x128xf32>,
    return
  }
  func.func @transform_0(%arg0: i32) -> (i32, i32) {
    %c0_i32 = arith.constant 0 : i32
    %c0_i32_0 = arith.constant 0 : i32
    return %arg0, %c0_i32 : i32, i32
  }
  func.func @transform_1(%arg0: i32) -> (i32, i32) {
    %c0_i32 = arith.constant 0 : i32
    %c0_i32_0 = arith.constant 0 : i32
    %c0_i32_1 = arith.constant 0 : i32
    return %c0_i32, %c0_i32_0 : i32, i32
  }
  func.func @transform_2(%arg0: i32) -> (i32, i32) {
    %c0_i32 = arith.constant 0 : i32
    %c0_i32_0 = arith.constant 0 : i32
    %c0_i32_1 = arith.constant 0 : i32
    return %c0_i32, %c0_i32_0 : i32, i32
  }
  func.func @transform_3(%arg0: i32) -> (i32, i32) {
    %c0_i32 = arith.constant 0 : i32
    %c0_i32_0 = arith.constant 0 : i32
    %c0_i32_1 = arith.constant 0 : i32
    return %c0_i32, %c0_i32_0 : i32, i32
  }
  func.func @transform_4(%arg0: i32) -> (i32, i32) {
    %c0_i32 = arith.constant 0 : i32
    %c0_i32_0 = arith.constant 0 : i32
    %c0_i32_1 = arith.constant 0 : i32
    return %c0_i32, %c0_i32_0 : i32, i32
  }
  func.func @transform_5(%arg0: i32) -> (i32, i32) {
    %c0_i32 = arith.constant 0 : i32
    %c0_i32_0 = arith.constant 0 : i32
    return %arg0, %c0_i32 : i32, i32
  }
}

</mosaic_0001>

<llo_original>
// kernel: resblock.1
$region0: #{resblock.1}
  #allocation0 [shape = 'u32[]', space=smem, size = 0x4, offset = 0x4, fixed_abs, tag = 'smem constant byte address 0x4 - core index']
  #allocation1 [shape = 'u32[144,128]{1,0:T(1,128)}', space=vmem, size = 0x12000, scoped, tag = 'internal scratch']
  %s0 = inlined_call_operand.vmem [shape: f32[16,128], index: 0, kind: input, shape index: {}]
  %s1 = inlined_call_operand.vmem [shape: bf16[128,128], index: 1, kind: input, shape index: {}]
  %s2 = inlined_call_operand.vmem [shape: f32[1,128], index: 2, kind: input, shape index: {}]
  %s3 = inlined_call_operand.vmem [shape: bf16[128,128], index: 3, kind: input, shape index: {}]
  %s4 = inlined_call_operand.vmem [shape: f32[1,128], index: 4, kind: input, shape index: {}]
  %s5 = inlined_call_operand.hbm [shape: f32[16,128], index: 5, kind: output, shape index: {}]
  %s6 = sld [smem:[#allocation0]]
  $region30: #{resblock.1} parent=0
    _
  %s8 = ssub.s32 1, %s6
  %s9 = scalar_select 0, %s8, %s6
  $region1: #{resblock.1} parent=0
    #allocation2 [shape = 'u8[8192]{0}', space=vmem, size = 0x2000, scoped, tag = 'output window, operand 0, single buffered']
    #allocation3 [shape = 's32[1]{0}', space=sflag, size = 0x4, scoped, tag = 'scoped memory for resblock.1']
    %10 = vsyncpa [#allocation3], 0
    // Predicated region
    $region2: #{resblock.1} parent=1 // pred_check
      _
    $region3: #{resblock.1} parent=1 // pred_check_branch
      %12 = sbr.rel (0) target = $region5
    $region4: #{resblock.1} parent=1 // pred_region
      _
    $region5: #{resblock.1} parent=1 // pred_fallthru
      _
    // Predicated region
    $region6: #{resblock.1} parent=1 // pred_check
      _
    $region7: #{resblock.1} parent=1 // pred_check_branch
      %14 = sbr.rel (0) target = $region9
    $region8: #{resblock.1} parent=1 // pred_region
      _
    $region9: #{resblock.1} parent=1 // pred_fallthru
      _
    // Predicated region
    $region10: #{resblock.1} parent=1 // pred_check
      _
    $region11: #{resblock.1} parent=1 // pred_check_branch
      %16 = sbr.rel (0) target = $region13
    $region12: #{resblock.1} parent=1 // pred_region
      _
    $region13: #{resblock.1} parent=1 // pred_fallthru
      _
    // Predicated region
    $region14: #{resblock.1} parent=1 // pred_check
      _
    $region15: #{resblock.1} parent=1 // pred_check_branch
      %18 = sbr.rel (0) target = $region17
    $region16: #{resblock.1} parent=1 // pred_region
      _
    $region17: #{resblock.1} parent=1 // pred_fallthru
      _
    // Predicated region
    $region18: #{resblock.1} parent=1 // pred_check
      _
    $region19: #{resblock.1} parent=1 // pred_check_branch
      %20 = sbr.rel (0) target = $region21
    $region20: #{resblock.1} parent=1 // pred_region
      _
    $region21: #{resblock.1} parent=1 // pred_fallthru
      _
    %v22 = vld [vmem:[%s0] sm:$0xff]
    %v23 = vld [vmem:[%s0 + $0x8] sm:$0xff]
    %v24 = vpack.c.bf16 %v23, %v22
    %v25 = vld [vmem:[%s1] sm:$0xf]
    %v26 = vld [vmem:[%s1 + $0x4] sm:$0xf]
    %v27 = vld [vmem:[%s1 + $0x8] sm:$0xf]
    %v28 = vld [vmem:[%s1 + $0xc] sm:$0xf]
    %v29 = vld [vmem:[%s1 + $0x10] sm:$0xf]
    %v30 = vld [vmem:[%s1 + $0x14] sm:$0xf]
    %v31 = vld [vmem:[%s1 + $0x18] sm:$0xf]
    %v32 = vld [vmem:[%s1 + $0x1c] sm:$0xf]
    %v33 = vld [vmem:[%s1 + $0x20] sm:$0xf]
    %v34 = vld [vmem:[%s1 + $0x24] sm:$0xf]
    %v35 = vld [vmem:[%s1 + $0x28] sm:$0xf]
    %v36 = vld [vmem:[%s1 + $0x2c] sm:$0xf]
    %v37 = vld [vmem:[%s1 + $0x30] sm:$0xf]
    %v38 = vld [vmem:[%s1 + $0x34] sm:$0xf]
    %v39 = vld [vmem:[%s1 + $0x38] sm:$0xf]
    %v40 = vld [vmem:[%s1 + $0x3c] sm:$0xf]
    %v41 = vld [vmem:[%s2] sm:$0x1]
    %v43 = vlaneseq
    %v44 = vshrl.u32 %v43, 7
    %v45 = vsub.s32 0, %v44
    %v46 = vrot.slane %v41, %v45
    %v64 = vunpack.c.l.b16 %v25
    %v65 = vunpack.c.l.b16 %v26
    %v66 = vunpack.c.l.b16 %v27
    %v67 = vunpack.c.l.b16 %v28
    %v68 = vunpack.c.l.b16 %v29
    %v69 = vunpack.c.l.b16 %v30
    %v70 = vunpack.c.l.b16 %v31
    %v71 = vunpack.c.l.b16 %v32
    %v72 = vunpack.c.l.b16 %v33
    %v73 = vunpack.c.l.b16 %v34
    %v74 = vunpack.c.l.b16 %v35
    %v75 = vunpack.c.l.b16 %v36
    %v76 = vunpack.c.l.b16 %v37
    %v77 = vunpack.c.l.b16 %v38
    %v78 = vunpack.c.l.b16 %v39
    %v79 = vunpack.c.l.b16 %v40
    %v80 = vpack.c.b16 %v65, %v64
    %v81 = vpack.c.b16 %v67, %v66
    %v82 = vpack.c.b16 %v69, %v68
    %v83 = vpack.c.b16 %v71, %v70
    %v84 = vpack.c.b16 %v73, %v72
    %v85 = vpack.c.b16 %v75, %v74
    %v86 = vpack.c.b16 %v77, %v76
    %v87 = vpack.c.b16 %v79, %v78
    %96 = vmatprep.subr.bf16.mxu0 0
    %97 = vmatpush1.bf16.msra.mxu0 %v80
    %98 = vmatprep.subr.bf16.mxu0 0
    %99 = vmatpush1.bf16.msra.mxu0 %v81
    %100 = vmatprep.subr.bf16.mxu0 0
    %101 = vmatpush1.bf16.msra.mxu0 %v82
    %102 = vmatprep.subr.bf16.mxu0 0
    %103 = vmatpush1.bf16.msra.mxu0 %v83
    %104 = vmatprep.subr.bf16.mxu0 0
    %105 = vmatpush1.bf16.msra.mxu0 %v84
    %106 = vmatprep.subr.bf16.mxu0 0
    %107 = vmatpush1.bf16.msra.mxu0 %v85
    %108 = vmatprep.subr.bf16.mxu0 0
    %109 = vmatpush1.bf16.msra.mxu0 %v86
    %110 = vmatprep.subr.bf16.mxu0 0
    %111 = vmatpush1.bf16.msra.mxu0 %v87
    %112 = vmatprep.subr.bf16.mxu0 0
    %113 = vmatpush1.bf16.msra.mxu0 0
    %114 = vmatprep.subr.bf16.mxu0 0
    %115 = vmatpush1.bf16.msra.mxu0 0
    %116 = vmatprep.subr.bf16.mxu0 0
    %117 = vmatpush1.bf16.msra.mxu0 0
    %118 = vmatprep.subr.bf16.mxu0 0
    %119 = vmatpush1.bf16.msra.mxu0 0
    %120 = vmatprep.subr.bf16.mxu0 0
    %121 = vmatpush1.bf16.msra.mxu0 0
    %122 = vmatprep.subr.bf16.mxu0 0
    %123 = vmatpush1.bf16.msra.mxu0 0
    %124 = vmatprep.subr.bf16.mxu0 0
    %125 = vmatpush1.bf16.msra.mxu0 0
    %126 = vmatprep.subr.bf16.mxu0 0
    %127 = vmatpush1.bf16.msra.mxu0 0
    %128 = vmatprep.mubr.bf16.mxu0 0
    %129 = vmatmul.mubr.bf16.gmra.mrb[0].mxu0 %v24
    %v130 = vpop.f32.mrb[0].mxu0
    %v131 = vadd.f32 %v46, %v130
    %v132 = vpop.f32.mrb[0].mxu0
    %v133 = vpop.f32.mrb[0].mxu0
    %v134 = vadd.f32 %v46, %v133
    %v135 = vpop.f32.mrb[0].mxu0
    %136 = vdwg.mxu0
    %v137 = vmax.f32 %v131, 0.0
    %v138 = vmax.f32 %v134, 0.0
    %v139 = vpack.c.bf16 %v138, %v137
    %v140 = vld [vmem:[%s3] sm:$0xf]
    %v141 = vld [vmem:[%s3 + $0x4] sm:$0xf]
    %v142 = vld [vmem:[%s3 + $0x8] sm:$0xf]
    %v143 = vld [vmem:[%s3 + $0xc] sm:$0xf]
    %v144 = vld [vmem:[%s3 + $0x10] sm:$0xf]
    %v145 = vld [vmem:[%s3 + $0x14] sm:$0xf]
    %v146 = vld [vmem:[%s3 + $0x18] sm:$0xf]
    %v147 = vld [vmem:[%s3 + $0x1c] sm:$0xf]
    %v148 = vld [vmem:[%s3 + $0x20] sm:$0xf]
    %v149 = vld [vmem:[%s3 + $0x24] sm:$0xf]
    %v150 = vld [vmem:[%s3 + $0x28] sm:$0xf]
    %v151 = vld [vmem:[%s3 + $0x2c] sm:$0xf]
    %v152 = vld [vmem:[%s3 + $0x30] sm:$0xf]
    %v153 = vld [vmem:[%s3 + $0x34] sm:$0xf]
    %v154 = vld [vmem:[%s3 + $0x38] sm:$0xf]
    %v155 = vld [vmem:[%s3 + $0x3c] sm:$0xf]
    %v156 = vld [vmem:[%s4] sm:$0x1]
    %v158 = vlaneseq
    %v159 = vshrl.u32 %v158, 7
    %v160 = vsub.s32 0, %v159
    %v161 = vrot.slane %v156, %v160
    %v179 = vunpack.c.l.b16 %v140
    %v180 = vunpack.c.l.b16 %v141
    %v181 = vunpack.c.l.b16 %v142
    %v182 = vunpack.c.l.b16 %v143
    %v183 = vunpack.c.l.b16 %v144
    %v184 = vunpack.c.l.b16 %v145
    %v185 = vunpack.c.l.b16 %v146
    %v186 = vunpack.c.l.b16 %v147
    %v187 = vunpack.c.l.b16 %v148
    %v188 = vunpack.c.l.b16 %v149
    %v189 = vunpack.c.l.b16 %v150
    %v190 = vunpack.c.l.b16 %v151
    %v191 = vunpack.c.l.b16 %v152
    %v192 = vunpack.c.l.b16 %v153
    %v193 = vunpack.c.l.b16 %v154
    %v194 = vunpack.c.l.b16 %v155
    %v195 = vpack.c.b16 %v180, %v179
    %v196 = vpack.c.b16 %v182, %v181
    %v197 = vpack.c.b16 %v184, %v183
    %v198 = vpack.c.b16 %v186, %v185
    %v199 = vpack.c.b16 %v188, %v187
    %v200 = vpack.c.b16 %v190, %v189
    %v201 = vpack.c.b16 %v192, %v191
    %v202 = vpack.c.b16 %v194, %v193
    %211 = vmatprep.subr.bf16.mxu0 0
    %212 = vmatpush1.bf16.msra.mxu0 %v195
    %213 = vmatprep.subr.bf16.mxu0 0
    %214 = vmatpush1.bf16.msra.mxu0 %v196
    %215 = vmatprep.subr.bf16.mxu0 0
    %216 = vmatpush1.bf16.msra.mxu0 %v197
    %217 = vmatprep.subr.bf16.mxu0 0
    %218 = vmatpush1.bf16.msra.mxu0 %v198
    %219 = vmatprep.subr.bf16.mxu0 0
    %220 = vmatpush1.bf16.msra.mxu0 %v199
    %221 = vmatprep.subr.bf16.mxu0 0
    %222 = vmatpush1.bf16.msra.mxu0 %v200
    %223 = vmatprep.subr.bf16.mxu0 0
    %224 = vmatpush1.bf16.msra.mxu0 %v201
    %225 = vmatprep.subr.bf16.mxu0 0
    %226 = vmatpush1.bf16.msra.mxu0 %v202
    %227 = vmatprep.subr.bf16.mxu0 0
    %228 = vmatpush1.bf16.msra.mxu0 0
    %229 = vmatprep.subr.bf16.mxu0 0
    %230 = vmatpush1.bf16.msra.mxu0 0
    %231 = vmatprep.subr.bf16.mxu0 0
    %232 = vmatpush1.bf16.msra.mxu0 0
    %233 = vmatprep.subr.bf16.mxu0 0
    %234 = vmatpush1.bf16.msra.mxu0 0
    %235 = vmatprep.subr.bf16.mxu0 0
    %236 = vmatpush1.bf16.msra.mxu0 0
    %237 = vmatprep.subr.bf16.mxu0 0
    %238 = vmatpush1.bf16.msra.mxu0 0
    %239 = vmatprep.subr.bf16.mxu0 0
    %240 = vmatpush1.bf16.msra.mxu0 0
    %241 = vmatprep.subr.bf16.mxu0 0
    %242 = vmatpush1.bf16.msra.mxu0 0
    %243 = vmatprep.mubr.bf16.mxu0 0
    %244 = vmatmul.mubr.bf16.gmra.mrb[0].mxu0 %v139
    %v245 = vpop.f32.mrb[0].mxu0
    %v246 = vadd.f32 %v161, %v245
    %v247 = vpop.f32.mrb[0].mxu0
    %v248 = vpop.f32.mrb[0].mxu0
    %v249 = vadd.f32 %v161, %v248
    %v250 = vpop.f32.mrb[0].mxu0
    %251 = vdwg.mxu0
    %v252 = vmax.f32 %v246, 0.0
    %v253 = vmax.f32 %v249, 0.0
    %v254 = vadd.f32 %v252, %v22
    %v255 = vadd.f32 %v253, %v23
    %v256 = vmul.f32 %v254, 0.01
    %v257 = vmul.f32 %v255, 0.01
    %v258 = vmax.f32 %v254, %v256
    %v259 = vmax.f32 %v255, %v257
    %260 = vst [vmem:[#allocation2] sm:$0xff] %v258
    %261 = vst [vmem:[#allocation2 + $0x8] sm:$0xff] %v259
    // Predicated region
    $region22: #{resblock.1} parent=1 // pred_check
      _
    $region23: #{resblock.1} parent=1 // pred_check_branch
      %263 = sbr.rel (0) target = $region25
    $region24: #{resblock.1} parent=1 // pred_region
      %s265 = ssub.s32 256, 256
      %266 = vsyncadd [#allocation3], %s265
      %s267 = sshll.u32 [#allocation2], 4
      %s268 = int_to_ptr.vmem [resolvable:$true] %s267
      %273 = dma.vmem_to_hbm [thread:$0]  %s268, 256, %s5, [#allocation3], 128, 128, 8
    $region25: #{resblock.1} parent=1 // pred_fallthru
      _
    // Predicated region
    $region26: #{resblock.1} parent=1 // pred_check
      _
    $region27: #{resblock.1} parent=1 // pred_check_branch
      %275 = sbr.rel (0) target = $region29
    $region28: #{resblock.1} parent=1 // pred_region
      %276 = dma.done [#allocation3], 256
    $region29: #{resblock.1} parent=1 // pred_fallthru
      _
    %277 = vsyncpa [#allocation3], 1

</llo_original>
